<compile_context>
chip_gen: v7x
topology: tpu7x:2x2x1
jax: 0.10.0
libtpu: 0.0.40
codegen_flags: <defaults>
</compile_context>

<pallas_src>
import functools

import jax
import jax.numpy as jnp
import numpy as np
from jax import lax
from jax.experimental import pallas as pl
from jax.experimental.pallas import tpu as pltpu


def _nontransition_kernel(cq_ref, ck_ref, z_ref, y_ref, *, k, n_total):
    # cq_ref: (1, TQ, CC)     query coords, channels-last (tiny, per-tile)
    # ck_ref: (1, CC, N)      key coords, native NCW layout (resident per batch)
    # z_ref:  (1, C_out, N)   per-point features after 1x1 conv, bf16 (resident per batch)
    # y_ref:  (1, C_out, TQ)  output tile, NCW (lane-dense along TQ)
    cq = cq_ref[0].astype(jnp.float32)       # (TQ, CC)
    ck = ck_ref[0].astype(jnp.float32)       # (CC, N)
    z = z_ref[0]                             # (C_out, N), bf16

    tq, cc = cq.shape
    n = ck.shape[1]
    c_out = z.shape[0]

    # Squared distances on the VPU: dist[i, j] = sum_c (cq[i, c] - ck[c, j])^2
    dist = jnp.zeros((tq, n), dtype=jnp.float32)
    for c in range(cc):                      # cc == 3, static
        diff = cq[:, c:c + 1] - ck[c:c + 1, :]       # (TQ,1) - (1,N) -> (TQ, N)
        dist = dist + diff * diff

    # Column (key) index iota, built once per tile and NOT carried through the loop.
    col = lax.broadcasted_iota(jnp.int32, (tq, n), 1)

    y0 = jnp.full((c_out, tq), -jnp.inf, dtype=jnp.float32)

    def body(step, carry):
        d, y = carry
        dmin = jnp.min(d, axis=-1, keepdims=True)                          # (TQ, 1)
        # First (lowest) index attaining the row minimum -> exact parity with the
        # reference's stable argsort tie-break.
        # TODO(synk): switch to a single jnp.argmin once first-index tie-break of the
        # Mosaic lowering is verified; the two-reduce scheme below is guaranteed correct.
        first_idx = jnp.min(jnp.where(d == dmin, col, n_total),
                            axis=-1, keepdims=True)                        # (TQ, 1)
        mask = col == first_idx                                            # (TQ, N), reused
        onehot = mask.astype(jnp.bfloat16)                                 # exact 0/1 in bf16
        # cand[o, i] = z[o, first_idx[i]]  -- bf16 MXU matmul contracting over N;
        # output lane dim is TQ (>=128 for real shapes), not the narrow C_out.
        cand = lax.dot_general(z, onehot,
                               dimension_numbers=(((1,), (1,)), ((), ())),
                               preferred_element_type=jnp.float32)         # (C_out, TQ)
        y = jnp.maximum(y, cand)
        d = jnp.where(mask, jnp.inf, d)                                    # remove selected key
        return d, y

    _, y = lax.fori_loop(0, k, body, (dist, y0))
    y_ref[0] = y.astype(y_ref.dtype)


def non_transition_forward(x, coords, w, k, *, tq=128):
    """x: (B, C_in, N), coords: (B, Cc, N), w: (C_out, C_in).  Returns (y, coords)
    with y: (B, C_out, N), matching the PyTorch module (NCW in, NCW out)."""
    b, c_in, n = x.shape
    _, cc, _ = coords.shape
    c_out = w.shape[0]
    if k > n:
        raise ValueError(f"k={k} must be <= number of points N={n}")

    # Hoist the 1x1 conv out of the hot loop: one XLA matmul per call, already in NCW.
    # Cast to bf16 for the kernel: halves HBM/VMEM traffic and feeds the bf16 MXU path.
    z = jnp.einsum('oc,bcn->bon', w.astype(jnp.float32),
                   x.astype(jnp.float32)).astype(jnp.bfloat16)   # (B, C_out, N)

    coords_k = coords.astype(jnp.float32)                        # (B, Cc, N) native, keys
    coords_q = jnp.transpose(coords_k, (0, 2, 1))                # (B, N, Cc) tiny, queries

    # Query tile: biggest lane-dense tile that divides N (and obeys the (8,128) rule).
    tq = min(tq, n)
    if n % tq != 0:
        tq = n   # TODO(synk): pad N to a multiple of 128 for ragged point counts
    num_q = n // tq

    kernel = functools.partial(_nontransition_kernel, k=k, n_total=n)

    y = pl.pallas_call(
        kernel,
        out_shape=jax.ShapeDtypeStruct((b, c_out, n), jnp.float32),
        grid_spec=pltpu.PrefetchScalarGridSpec(
            num_scalar_prefetch=0,
            grid=(b, num_q),
            in_specs=[
                # query coords: one (TQ, Cc) tile per grid step
                pl.BlockSpec((1, tq, cc), lambda i, q: (i, q, 0)),
                # key coords: full N, constant across the q axis -> DMA'd once per batch
                pl.BlockSpec((1, cc, n), lambda i, q: (i, 0, 0)),
                # z features: full N, constant across the q axis -> DMA'd once per batch
                pl.BlockSpec((1, c_out, n), lambda i, q: (i, 0, 0)),
            ],
            # NCW output tile: last dim TQ -> unmasked lane-dense stores
            out_specs=pl.BlockSpec((1, c_out, tq), lambda i, q: (i, 0, q)),
        ),
        compiler_params=pltpu.CompilerParams(
            # batch and query-tile axes are fully independent -> megacore-shardable on v7x
            dimension_semantics=("parallel", "parallel"),
            # explicit scoped-VMEM budget; on v7x (64 MiB physical) shrink tq instead of
            # raising this further.
            vmem_limit_bytes=48 * 1024 * 1024,
        ),
    )(coords_q, coords_k, z)

    return y, coords


def _reference_forward(x, coords, w, k):
    """Pure-JAX reference matching the PyTorch forward exactly (f32)."""
    c = jnp.transpose(coords, (0, 2, 1))                               # (B, N, Cc)
    d = jnp.sum((c[:, :, None, :] - c[:, None, :, :]) ** 2, axis=-1)   # (B, N, N)
    idx = jnp.argsort(d, axis=-1)[:, :, :k]                            # (B, N, k)
    knn_x = jnp.take_along_axis(
        x[:, :, None, :], idx[:, None, :, :], axis=-1)                 # (B, C_in, N, k)
    z = jnp.einsum('oc,bcnk->bonk', w, knn_x)                          # (B, C_out, N, k)
    return jnp.max(z, axis=-1)                                         # (B, C_out, N)


if __name__ == "__main__":
    B, C_IN, C_OUT, N, CC, K = 2, 8, 16, 16, 3, 4

    key = jax.random.PRNGKey(0)
    kx, kc, kw = jax.random.split(key, 3)
    x = jax.random.normal(kx, (B, C_IN, N), dtype=jnp.float32)
    coords = jax.random.normal(kc, (B, CC, N), dtype=jnp.float32)
    # Deterministic "PointwiseConv2D" weight (1x1 conv, no bias): (C_out, C_in)
    w = jax.random.normal(kw, (C_OUT, C_IN), dtype=jnp.float32) * 0.1

    y, coords_out = non_transition_forward(x, coords, w, K)
    y = jax.block_until_ready(y)

    y_ref = _reference_forward(x, coords, w, K)
    # Kernel gathers bf16-rounded features (exact one-hot, f32 accumulation), so the
    # result equals the f32 reference up to bf16 rounding of z.
    np.testing.assert_allclose(np.asarray(y), np.asarray(y_ref), rtol=2e-2, atol=2e-2)
    assert coords_out.shape == coords.shape

    print("KERNEL_OK")
</pallas_src>

<mosaic_0001>
module attributes {stable_mosaic.version = 11 : i64} {
  func.func @_nontransition_kernel(%arg0: i32, %arg1: i32, %arg2: memref<1x16x3xf32, #tpu.memory_space<vmem>>, %arg3: memref<1x3x16xf32, #tpu.memory_space<vmem>>, %arg4: memref<1x16x16xbf16, #tpu.memory_space<vmem>>, %arg5: memref<1x16x16xf32, #tpu.memory_space<vmem>>) attributes {dimension_semantics = [#tpu.dimension_semantics<parallel>, #tpu.dimension_semantics<parallel>], iteration_bounds = array<i64: 2, 1>, scalar_prefetch = 0 : i64, scratch_operands = 0 : i64, tpu.core_type = #tpu.core_type<tc>, window_params = [{transform_indices = @transform_0, window_bounds = array<i64: 1, 16, 3>}, {transform_indices = @transform_1, window_bounds = array<i64: 1, 3, 16>}, {transform_indices = @transform_2, window_bounds = array<i64: 1, 16, 16>}, {transform_indices = @transform_3, window_bounds = array<i64: 1, 16, 16>}]} {
    %c0 = arith.constant 0 : index
    %c0_0 = arith.constant 0 : index
    %c0_1 = arith.constant 0 : index
    %0 = vector.load %arg2[%c0, %c0_0, %c0_1] : memref<1x16x3xf32, #tpu.memory_space<vmem>>, vector<1x16x3xf32>
    %1 = vector.shape_cast %0 : vector<1x16x3xf32> to vector<16x3xf32>
    %c0_2 = arith.constant 0 : index
    %c0_3 = arith.constant 0 : index
    %c0_4 = arith.constant 0 : index
    %2 = vector.load %arg3[%c0_2, %c0_3, %c0_4] : memref<1x3x16xf32, #tpu.memory_space<vmem>>, vector<1x3x16xf32>
    %3 = vector.shape_cast %2 : vector<1x3x16xf32> to vector<3x16xf32>
    %c0_5 = arith.constant 0 : index
    %c0_6 = arith.constant 0 : index
    %c0_7 = arith.constant 0 : index
    %4 = vector.load %arg4[%c0_5, %c0_6, %c0_7] : memref<1x16x16xbf16, #tpu.memory_space<vmem>>, vector<1x16x16xbf16>
    %5 = vector.shape_cast %4 : vector<1x16x16xbf16> to vector<16x16xbf16>
    %cst = arith.constant 0.000000e+00 : f32
    %6 = vector.broadcast %cst : f32 to vector<16x16xf32>
    %7 = vector.extract_strided_slice %1 {offsets = [0, 0], sizes = [16, 1], strides = [1, 1]} : vector<16x3xf32> to vector<16x1xf32>
    %8 = vector.extract_strided_slice %3 {offsets = [0, 0], sizes = [1, 16], strides = [1, 1]} : vector<3x16xf32> to vector<1x16xf32>
    %9 = vector.broadcast %7 : vector<16x1xf32> to vector<16x16xf32>
    %10 = vector.broadcast %8 : vector<1x16xf32> to vector<16x16xf32>
    %11 = arith.subf %9, %10 : vector<16x16xf32>
    %12 = arith.mulf %11, %11 : vector<16x16xf32>
    %13 = arith.addf %6, %12 : vector<16x16xf32>
    %14 = vector.extract_strided_slice %1 {offsets = [0, 1], sizes = [16, 1], strides = [1, 1]} : vector<16x3xf32> to vector<16x1xf32>
    %15 = vector.extract_strided_slice %3 {offsets = [1, 0], sizes = [1, 16], strides = [1, 1]} : vector<3x16xf32> to vector<1x16xf32>
    %16 = vector.broadcast %14 : vector<16x1xf32> to vector<16x16xf32>
    %17 = vector.broadcast %15 : vector<1x16xf32> to vector<16x16xf32>
    %18 = arith.subf %16, %17 : vector<16x16xf32>
    %19 = arith.mulf %18, %18 : vector<16x16xf32>
    %20 = arith.addf %13, %19 : vector<16x16xf32>
    %21 = vector.extract_strided_slice %1 {offsets = [0, 2], sizes = [16, 1], strides = [1, 1]} : vector<16x3xf32> to vector<16x1xf32>
    %22 = vector.extract_strided_slice %3 {offsets = [2, 0], sizes = [1, 16], strides = [1, 1]} : vector<3x16xf32> to vector<1x16xf32>
    %23 = vector.broadcast %21 : vector<16x1xf32> to vector<16x16xf32>
    %24 = vector.broadcast %22 : vector<1x16xf32> to vector<16x16xf32>
    %25 = arith.subf %23, %24 : vector<16x16xf32>
    %26 = arith.mulf %25, %25 : vector<16x16xf32>
    %27 = arith.addf %20, %26 : vector<16x16xf32>
    %28 = tpu.iota {dimensions = array<i32: 1>} : vector<16x16xi32>
    %cst_8 = arith.constant 0xFF800000 : f32
    %29 = vector.broadcast %cst_8 : f32 to vector<16x16xf32>
    %c0_i32 = arith.constant 0 : i32
    %c4_i32 = arith.constant 4 : i32
    %30 = arith.addi %c0_i32, %c4_i32 : i32
    %c1_i32 = arith.constant 1 : i32
    %31:2 = scf.for %arg6 = %c0_i32 to %30 step %c1_i32 iter_args(%arg7 = %27, %arg8 = %29) -> (vector<16x16xf32>, vector<16x16xf32>)  : i32 {
      %cst_12 = arith.constant dense<0x7F800000> : vector<16xf32>
      %35 = vector.multi_reduction <minimumf>, %arg7, %cst_12 [1] : vector<16x16xf32> to vector<16xf32>
      %36 = vector.shape_cast %35 : vector<16xf32> to vector<16x1xf32>
      %37 = vector.broadcast %36 : vector<16x1xf32> to vector<16x16xf32>
      %38 = arith.cmpf oeq, %arg7, %37 : vector<16x16xf32>
      %c16_i32 = arith.constant 16 : i32
      %39 = vector.broadcast %c16_i32 : i32 to vector<16x16xi32>
      %40 = arith.select %38, %28, %39 : vector<16x16xi1>, vector<16x16xi32>
      %cst_13 = arith.constant dense<2147483647> : vector<16xi32>
      %41 = vector.multi_reduction <minsi>, %40, %cst_13 [1] : vector<16x16xi32> to vector<16xi32>
      %42 = vector.shape_cast %41 : vector<16xi32> to vector<16x1xi32>
      %43 = vector.broadcast %42 : vector<16x1xi32> to vector<16x16xi32>
      %44 = arith.cmpi eq, %28, %43 : vector<16x16xi32>
      %45 = arith.extui %44 : vector<16x16xi1> to vector<16x16xi32>
      %46 = arith.sitofp %45 : vector<16x16xi32> to vector<16x16xf32>
      %47 = arith.truncf %46 : vector<16x16xf32> to vector<16x16xbf16>
      %cst_14 = arith.constant dense<0.000000e+00> : vector<16x16xf32>
      %48 = tpu.matmul %5, %47, %cst_14 {dimension_numbers = #tpu.dot_dimension_numbers<[1], [1], [0], [0], [0, 0, 1, 0], [], []>} : vector<16x16xbf16>, vector<16x16xbf16>, vector<16x16xf32> -> vector<16x16xf32>
      %49 = arith.maximumf %arg8, %48 : vector<16x16xf32>
      %cst_15 = arith.constant 0x7F800000 : f32
      %50 = vector.broadcast %cst_15 : f32 to vector<16x16xf32>
      %51 = arith.select %44, %50, %arg7 : vector<16x16xi1>, vector<16x16xf32>
      scf.yield %51, %49 : vector<16x16xf32>, vector<16x16xf32>
    }
    %c0_9 = arith.constant 0 : index
    %c0_10 = arith.constant 0 : index
    %c0_11 = arith.constant 0 : index
    %32 = vector.load %arg5[%c0_9, %c0_10, %c0_11] : memref<1x16x16xf32, #tpu.memory_space<vmem>>, vector<1x16x16xf32>
    %33 = vector.shape_cast %32 : vector<1x16x16xf32> to vector<16x16xf32>
    %34 = vector.shape_cast %31#1 : vector<16x16xf32> to vector<1x16x16xf32>
    tpu.vector_store %arg5[%c0_9, %c0_10, %c0_11], %34 {strides = array<i32>} : memref<1x16x16xf32, #tpu.memory_space<vmem>>, vector<1x16x16xf32>,
    return
  }
  func.func @transform_0(%arg0: i32, %arg1: i32) -> (i32, i32, i32) {
    %c0_i32 = arith.constant 0 : i32
    %c0_i32_0 = arith.constant 0 : i32
    return %arg0, %arg1, %c0_i32 : i32, i32, i32
  }
  func.func @transform_1(%arg0: i32, %arg1: i32) -> (i32, i32, i32) {
    %c0_i32 = arith.constant 0 : i32
    %c0_i32_0 = arith.constant 0 : i32
    %c0_i32_1 = arith.constant 0 : i32
    return %arg0, %c0_i32, %c0_i32_0 : i32, i32, i32
  }
  func.func @transform_2(%arg0: i32, %arg1: i32) -> (i32, i32, i32) {
    %c0_i32 = arith.constant 0 : i32
    %c0_i32_0 = arith.constant 0 : i32
    %c0_i32_1 = arith.constant 0 : i32
    return %arg0, %c0_i32, %c0_i32_0 : i32, i32, i32
  }
  func.func @transform_3(%arg0: i32, %arg1: i32) -> (i32, i32, i32) {
    %c0_i32 = arith.constant 0 : i32
    %c0_i32_0 = arith.constant 0 : i32
    return %arg0, %c0_i32, %arg1 : i32, i32, i32
  }
}

</mosaic_0001>

<llo_original>
// kernel: tpu_custom_call.1
$region0: #{tpu_custom_call.1}
  #allocation0 [shape = 'u32[]', space=smem, size = 0x4, offset = 0x4, fixed_abs, tag = 'smem constant byte address 0x4 - core index']
  #allocation1 [shape = 'u32[144,128]{1,0:T(1,128)}', space=vmem, size = 0x12000, scoped, tag = 'internal scratch']
  %s0 = inlined_call_operand.vmem [shape: f32[2,16,3], index: 0, kind: input, shape index: {}]
  %s1 = inlined_call_operand.vmem [shape: f32[2,3,16], index: 1, kind: input, shape index: {}]
  %s2 = inlined_call_operand.vmem [shape: bf16[2,16,16], index: 2, kind: input, shape index: {}]
  %s3 = inlined_call_operand.hbm [shape: f32[2,16,16], index: 3, kind: output, shape index: {}]
  %s4 = sld [smem:[#allocation0]]
  $region52: #{tpu_custom_call.1} parent=0
    _
  %s6 = ssub.s32 1, %s4
  %s7 = scalar_select 0, %s6, %s4
  $region1: #{tpu_custom_call.1} parent=0
    #allocation2 [shape = 'u8[16384]{0}', space=vmem, size = 0x4000, scoped, tag = 'output window, operand 0']
    #allocation3 [shape = 's32[2]{0}', space=sflag, size = 0x8, scoped, tag = 'scoped memory for tpu_custom_call.1']
    %8 = vsyncpa [#allocation3], 0
    %s9 = scalar_lea.sflag [#allocation3], 1
    %10 = vsyncpa %s9, 0
    loop: start=0, step=1, limit=4
    $region2: #{tpu_custom_call.1} parent=1 // loop_pre_header
      _
    $region3: #{tpu_custom_call.1} parent=1 // loop_header
      %s12 = sphi 0, %s16
      %p13 = scmp.ge.s32.totalorder %s12, 4
      %s19 = sphi 0, %s31
      %s20 = sphi 0, %s27
      %s21 = sphi 0, %s19
      %s22 = sphi 0, %s20
      %s23 = sphi 0, %s21
      %s24 = sphi 0, %s22
      %s36 = sphi 0, %s38
      %s39 = sphi 0, %s36
      %s40 = sphi 0, %s39
      %s56 = sphi 0, %s40
      %s62 = sphi 0, %s64
      %s65 = sphi 0, %s62
      %s66 = sphi 0, %s65
      %s82 = sphi 0, %s66
      %s88 = sphi 0, %s90
      %s91 = sphi 0, %s88
      %s92 = sphi 0, %s91
      %s108 = sphi 0, %s92
      %s116 = sphi 0, %s118
      %s119 = sphi 0, %s116
      %s120 = sphi 0, %s119
      %s136 = sphi 0, %s120
    $region4: #{tpu_custom_call.1} parent=1 // loop_header_branch
      %15 = sbr.rel (%p13) target = $region8
    $region5: #{tpu_custom_call.1} parent=1 // loop_body
      %s17 = ssub.s32 %s12, 1
      %s18 = ssub.s32 %s12, 2
      %s25 = sadd.s32 1, %s20
      %p26 = scmp.ge.s32.totalorder %s25, 1
      %s27 = scalar_select %p26, 0, %s25
      %s28 = sadd.s32 1, %s19
      %s29 = scalar_select %p26, %s28, %s19
      %p30 = scmp.ge.s32.totalorder %s29, 2
      %s31 = scalar_select %p30, 0, %s29
      %s32 = ssub.s32 %s19, %s31
      %s33 = ssub.s32 %s20, %s27
      %s34 = sor.u32 %s32, %s33
      %p35 = scmp.eq.s32.totalorder %s34, 0
      %s37 = sadd.s32 %s36, 1
      %s38 = scalar_select %p35, %s36, %s37
      %p41 = pneg %p35
      %p42 = scmp.eq.s32.totalorder %s12, 1
      %p43 = por %p41, %p42
      %p44 = scmp.ne.s32.totalorder %s36, %s39
      %p45 = scmp.eq.s32.totalorder %s12, 0
      %p46 = por %p44, %p45
      %p47 = scmp.ne.s32.totalorder %s36, %s39
      %p48 = scmp.eq.s32.totalorder %s17, 1
      %p49 = por %p47, %p48
      %p50 = scmp.ne.s32.totalorder %s39, %s40
      %p51 = scmp.eq.s32.totalorder %s17, 0
      %p52 = por %p50, %p51
      %p53 = scmp.ne.s32.totalorder %s39, %s40
      %p54 = scmp.eq.s32.totalorder %s18, 1
      %p55 = por %p53, %p54
      %p57 = scmp.ne.s32.totalorder %s40, %s56
      %p58 = scmp.eq.s32.totalorder %s18, 0
      %p59 = por %p57, %p58
      %s60 = ssub.s32 %s19, %s31
      %p61 = scmp.eq.s32.totalorder %s60, 0
      %s63 = sadd.s32 %s62, 1
      %s64 = scalar_select %p61, %s62, %s63
      %p67 = pneg %p61
      %p68 = scmp.eq.s32.totalorder %s12, 1
      %p69 = por %p67, %p68
      %p70 = scmp.ne.s32.totalorder %s62, %s65
      %p71 = scmp.eq.s32.totalorder %s12, 0
      %p72 = por %p70, %p71
      %p73 = scmp.ne.s32.totalorder %s62, %s65
      %p74 = scmp.eq.s32.totalorder %s17, 1
      %p75 = por %p73, %p74
      %p76 = scmp.ne.s32.totalorder %s65, %s66
      %p77 = scmp.eq.s32.totalorder %s17, 0
      %p78 = por %p76, %p77
      %p79 = scmp.ne.s32.totalorder %s65, %s66
      %p80 = scmp.eq.s32.totalorder %s18, 1
      %p81 = por %p79, %p80
      %p83 = scmp.ne.s32.totalorder %s66, %s82
      %p84 = scmp.eq.s32.totalorder %s18, 0
      %p85 = por %p83, %p84
      %s86 = ssub.s32 %s19, %s31
      %p87 = scmp.eq.s32.totalorder %s86, 0
      %s89 = sadd.s32 %s88, 1
      %s90 = scalar_select %p87, %s88, %s89
      %p93 = pneg %p87
      %p94 = scmp.eq.s32.totalorder %s12, 1
      %p95 = por %p93, %p94
      %p96 = scmp.ne.s32.totalorder %s88, %s91
      %p97 = scmp.eq.s32.totalorder %s12, 0
      %p98 = por %p96, %p97
      %p99 = scmp.ne.s32.totalorder %s88, %s91
      %p100 = scmp.eq.s32.totalorder %s17, 1
      %p101 = por %p99, %p100
      %p102 = scmp.ne.s32.totalorder %s91, %s92
      %p103 = scmp.eq.s32.totalorder %s17, 0
      %p104 = por %p102, %p103
      %p105 = scmp.ne.s32.totalorder %s91, %s92
      %p106 = scmp.eq.s32.totalorder %s18, 1
      %p107 = por %p105, %p106
      %p109 = scmp.ne.s32.totalorder %s92, %s108
      %p110 = scmp.eq.s32.totalorder %s18, 0
      %p111 = por %p109, %p110
      %s112 = ssub.s32 %s19, %s31
      %s113 = ssub.s32 %s20, %s27
      %s114 = sor.u32 %s112, %s113
      %p115 = scmp.eq.s32.totalorder %s114, 0
      %s117 = sadd.s32 %s116, 1
      %s118 = scalar_select %p115, %s116, %s117
      %p121 = pneg %p115
      %p122 = scmp.eq.s32.totalorder %s12, 1
      %p123 = por %p121, %p122
      %p124 = scmp.ne.s32.totalorder %s116, %s119
      %p125 = scmp.eq.s32.totalorder %s12, 0
      %p126 = por %p124, %p125
      %p127 = scmp.ne.s32.totalorder %s116, %s119
      %p128 = scmp.eq.s32.totalorder %s17, 1
      %p129 = por %p127, %p128
      %p130 = scmp.ne.s32.totalorder %s119, %s120
      %p131 = scmp.eq.s32.totalorder %s17, 0
      %p132 = por %p130, %p131
      %p133 = scmp.ne.s32.totalorder %s119, %s120
      %p134 = scmp.eq.s32.totalorder %s18, 1
      %p135 = por %p133, %p134
      %p137 = scmp.ne.s32.totalorder %s120, %s136
      %p138 = scmp.eq.s32.totalorder %s18, 0
      %p139 = por %p137, %p138
      %p140 = scmp.le.s32.totalorder 1, %s12
      %p141 = scmp.lt.s32.totalorder %s12, 3
      %p142 = pnand %p140, %p141
      %p143 = pneg %p142
      // Predicated region
      $region9: #{tpu_custom_call.1} parent=5 // pred_check
        _
      $region10: #{tpu_custom_call.1} parent=5 // pred_check_branch
        %145 = sbr.rel (%p142) target = $region12
      $region11: #{tpu_custom_call.1} parent=5 // pred_region
        %s146 = ssub.s32 %s12, 1
      $region12: #{tpu_custom_call.1} parent=5 // pred_fallthru
        _
      %p147 = scmp.lt.s32.totalorder %s12, 2
      // Predicated region
      $region13: #{tpu_custom_call.1} parent=5 // pred_check
        %p148 = pneg %p147
      $region14: #{tpu_custom_call.1} parent=5 // pred_check_branch
        %150 = sbr.rel (%p148) target = $region16
      $region15: #{tpu_custom_call.1} parent=5 // pred_region
        // Predicated region
        $region17: #{tpu_custom_call.1} parent=15 // pred_check
          %p151 = pneg %p46
        $region18: #{tpu_custom_call.1} parent=15 // pred_check_branch
          %153 = sbr.rel (%p151) target = $region20
        $region19: #{tpu_custom_call.1} parent=15 // pred_region
          %s154 = smul.u32 2, %s20
          %p155 = scmp.lt.s32.totalorder %s19, 1
          %s156 = scalar_select %p155, %s19, 1
          %p157 = scmp.lt.s32.totalorder %s154, 1
          %s158 = scalar_select %p157, %s154, 1
          %s159 = smul.addr %s156, 2
          %s160 = sadd.s32 %s158, %s159
          %s161 = smul.addr %s160, 8
          %s162 = scalar_lea.vmem %s0, %s161
          %s163 = smul.u32 2, %s20
        $region20: #{tpu_custom_call.1} parent=15 // pred_fallthru
          _
        // Predicated region
        $region21: #{tpu_custom_call.1} parent=15 // pred_check
          %p164 = pneg %p72
        $region22: #{tpu_custom_call.1} parent=15 // pred_check_branch
          %166 = sbr.rel (%p164) target = $region24
        $region23: #{tpu_custom_call.1} parent=15 // pred_region
          %p167 = scmp.lt.s32.totalorder %s19, 1
          %s168 = scalar_select %p167, %s19, 1
          %s169 = smul.addr %s168, 4
          %s170 = scalar_lea.vmem %s1, %s169
        $region24: #{tpu_custom_call.1} parent=15 // pred_fallthru
          _
        // Predicated region
        $region25: #{tpu_custom_call.1} parent=15 // pred_check
          %p171 = pneg %p98
        $region26: #{tpu_custom_call.1} parent=15 // pred_check_branch
          %173 = sbr.rel (%p171) target = $region28
        $region27: #{tpu_custom_call.1} parent=15 // pred_region
          %p174 = scmp.lt.s32.totalorder %s19, 1
          %s175 = scalar_select %p174, %s19, 1
          %s176 = smul.addr %s175, 2
          %s177 = smul.addr %s176, 4
          %s178 = scalar_lea.vmem %s2, %s177
        $region28: #{tpu_custom_call.1} parent=15 // pred_fallthru
          _
      $region16: #{tpu_custom_call.1} parent=5 // pred_fallthru
        _
      %p179 = scmp.le.s32.totalorder 1, %s12
      %p180 = scmp.lt.s32.totalorder %s12, 3
      %p181 = pnand %p179, %p180
      %p182 = pneg %p181
      // Predicated region
      $region29: #{tpu_custom_call.1} parent=5 // pred_check
        _
      $region30: #{tpu_custom_call.1} parent=5 // pred_check_branch
        %184 = sbr.rel (%p181) target = $region32
      $region31: #{tpu_custom_call.1} parent=5 // pred_region
        %s185 = ssub.s32 %s12, 1
        %s186 = smul.u32 2, %s22
        %p187 = scmp.lt.s32.totalorder %s21, 1
        %s188 = scalar_select %p187, %s21, 1
        %p189 = scmp.lt.s32.totalorder %s186, 1
        %s190 = scalar_select %p189, %s186, 1
        %s191 = smul.addr %s188, 2
        %s192 = sadd.s32 %s190, %s191
        %s193 = smul.addr %s192, 8
        %s194 = scalar_lea.vmem %s0, %s193
        %p195 = pneg %p52
        %p196 = pneg %p49
        %p197 = scmp.lt.s32.totalorder %s21, 1
        %s198 = scalar_select %p197, %s21, 1
        %s199 = smul.addr %s198, 4
        %s200 = scalar_lea.vmem %s1, %s199
        %p201 = pneg %p78
        %p202 = pneg %p75
        %p203 = scmp.lt.s32.totalorder %s21, 1
        %s204 = scalar_select %p203, %s21, 1
        %s205 = smul.addr %s204, 2
        %s206 = smul.addr %s205, 4
        %s207 = scalar_lea.vmem %s2, %s206
        %p208 = pneg %p104
        %p209 = pneg %p101
        %p210 = pneg %p132
        %p211 = pneg %p129
        %s212 = sand.u32 %s119, 1
        %s213 = scalar_lea.sflag [#allocation3], %s212
        %s214 = sand.u32 %s119, 1
        %s215 = smul.addr %s214, 16
        %s216 = scalar_lea.vmem [#allocation2], %s215
        %s217 = smul.u32 2, %s22
        %p218 = scmp.lt.s32.totalorder %s21, 1
        %s219 = scalar_select %p218, %s21, 1
        %p220 = scmp.lt.s32.totalorder %s217, 1
        %s221 = scalar_select %p220, %s217, 1
        %s222 = smul.addr %s219, 2
        %s223 = sadd.s32 %s221, %s222
        %s224 = smul.addr %s223, 8
        %s225 = scalar_lea.vmem %s0, %s224
        %s226 = smul.u32 2, %s22
        %p227 = scmp.lt.s32.totalorder %s21, 1
        %s228 = scalar_select %p227, %s21, 1
        %s229 = smul.addr %s228, 4
        %s230 = scalar_lea.vmem %s1, %s229
        %p231 = scmp.lt.s32.totalorder %s21, 1
        %s232 = scalar_select %p231, %s21, 1
        %s233 = smul.addr %s232, 2
        %s234 = smul.addr %s233, 4
        %s235 = scalar_lea.vmem %s2, %s234
        %v237 = vld [vmem:[%s225] sm:$0xff]
        %v238 = vld [vmem:[%s225 + $0x8] sm:$0xff]
        %v239 = vld [vmem:[%s230] sm:$0x7]
        %v240 = vld [vmem:[%s235] sm:$0xf]
        %v241 = vld [vmem:[%s235 + $0x4] sm:$0xf]
        %243 = vset.pattern.permute.xlu0 0
        %244 = vperm.xlu0 %243, %v237
        %v245 = vpop.permute.xlu0 %244
        %248 = vset.pattern.permute.xlu0 0
        %249 = vperm.xlu0 %248, %v238
        %v250 = vpop.permute.xlu0 %249
        %v252 = vlaneseq
        %v253 = vshrl.u32 %v252, 7
        %v254 = vsub.s32 0, %v253
        %v255 = vrot.slane %v239, %v254
        %v256 = vsub.f32 %v245, %v255
        %v257 = vsub.f32 %v250, %v255
        %v258 = vmul.f32 %v256, %v256
        %v259 = vmul.f32 %v257, %v257
        %v260 = vadd.f32 %v258, 0.0
        %v261 = vadd.f32 %v259, 0.0
        %262 = vset.pattern.permute.xlu0 1
        %263 = vperm.xlu0 %262, %v237
        %v264 = vpop.permute.xlu0 %263
        %266 = vset.pattern.permute.xlu0 1
        %267 = vperm.xlu0 %266, %v238
        %v268 = vpop.permute.xlu0 %267
        %v270 = vlaneseq
        %v271 = vshrl.u32 %v270, 7
        %v272 = vsub.s32 1, %v271
        %v273 = vrot.slane %v239, %v272
        %v274 = vsub.f32 %v264, %v273
        %v275 = vsub.f32 %v268, %v273
        %v276 = vmul.f32 %v274, %v274
        %v277 = vmul.f32 %v275, %v275
        %v278 = vadd.f32 %v260, %v276
        %v279 = vadd.f32 %v261, %v277
        %280 = vset.pattern.permute.xlu0 2
        %281 = vperm.xlu0 %280, %v237
        %v282 = vpop.permute.xlu0 %281
        %284 = vset.pattern.permute.xlu0 2
        %285 = vperm.xlu0 %284, %v238
        %v286 = vpop.permute.xlu0 %285
        %v288 = vlaneseq
        %v289 = vshrl.u32 %v288, 7
        %v290 = vsub.s32 2, %v289
        %v291 = vrot.slane %v239, %v290
        %v292 = vsub.f32 %v282, %v291
        %v293 = vsub.f32 %v286, %v291
        %v294 = vmul.f32 %v292, %v292
        %v295 = vmul.f32 %v293, %v293
        %v296 = vadd.f32 %v278, %v294
        %v297 = vadd.f32 %v279, %v295
        %v298 = vlaneseq
        %v299 = vand.u32 %v298, 127
        loop: start=0, step=1, limit=4
        $region33: #{tpu_custom_call.1} parent=31 // loop_pre_header
          _
        $region34: #{tpu_custom_call.1} parent=31 // loop_header
          %s301 = sphi 0, %s305
          %p302 = scmp.ge.s32.totalorder %s301, 4
          %v306 = vphi %v296, %v412
          %v307 = vphi %v297, %v413
          %v308 = vphi -inf, %v410
          %v309 = vphi -inf, %v411
        $region35: #{tpu_custom_call.1} parent=31 // loop_header_branch
          %304 = sbr.rel (%p302) target = $region39
        $region36: #{tpu_custom_call.1} parent=31 // loop_body
          %vm310 = vcmask 130048
          %v311 = vsel %vm310, %v306, inf
          %312 = vmin.xlane.f32.xlu0 %v311
          %v313 = vpop.xlane.xlu0 %312
          %v314 = vsel %vm310, %v307, inf
          %315 = vmin.xlane.f32.xlu0 %v314
          %v316 = vpop.xlane.xlu0 %315
          %vm317 = vcmp.eq.f32.partialorder %v306, %v313
          %vm318 = vcmp.eq.f32.partialorder %v307, %v316
          %v319 = vsel %vm317, %v299, 16
          %v320 = vsel %vm318, %v299, 16
          %v321 = vsel %vm310, %v319, 2147483647
          %v322 = vand.u32 %v321, 65535
          %v323 = vshra.s32 %v321, 16
          %v324 = vcvt.s32.f32 %v322
          %v325 = vcvt.s32.f32 %v323
          %326 = vmin.xlane.f32.xlu0 %v325
          %v327 = vpop.xlane.xlu0 %326
          %vm328 = vcmp.eq.f32.partialorder %v325, %v327
          %v329 = vsel %vm328, %v324, inf
          %330 = vmin.xlane.f32.xlu0 %v329
          %v331 = vpop.xlane.xlu0 %330
          %v332 = vcvt.f32.s32 %v331
          %v333 = vcvt.f32.s32 %v327
          %v334 = vshll.u32 %v333, 16
          %v335 = vadd.s32 %v334, %v332
          %v336 = vsel %vm310, %v320, 2147483647
          %v337 = vand.u32 %v336, 65535
          %v338 = vshra.s32 %v336, 16
          %v339 = vcvt.s32.f32 %v337
          %v340 = vcvt.s32.f32 %v338
          %341 = vmin.xlane.f32.xlu0 %v340
          %v342 = vpop.xlane.xlu0 %341
          %vm343 = vcmp.eq.f32.partialorder %v340, %v342
          %v344 = vsel %vm343, %v339, inf
          %345 = vmin.xlane.f32.xlu0 %v344
          %v346 = vpop.xlane.xlu0 %345
          %v347 = vcvt.f32.s32 %v346
          %v348 = vcvt.f32.s32 %v342
          %v349 = vshll.u32 %v348, 16
          %v350 = vadd.s32 %v349, %v347
          %vm351 = vcmp.eq.s32.totalorder %v299, %v335
          %vm352 = vcmp.eq.s32.totalorder %v299, %v350
          %v353 = vsel %vm351, 1, 0
          %v354 = vsel %vm352, 1, 0
          %v355 = vcvt.s32.f32 %v353
          %v356 = vcvt.s32.f32 %v354
          %v357 = vpack.c.bf16 %v356, %v355
          %v360 = vunpack.c.l.b16 %v240
          %v361 = vunpack.c.l.b16 %v241
          %v362 = vpack.c.b16 %v361, %v360
          %v364 = vsel %vm310, %v362, 0
          %v367 = vsel %vm310, %v357, 0
          %369 = vmatprep.subr.bf16.mxu0 0
          %370 = vmatpush1.bf16.xpose.msra.mxu0 %v367
          %371 = vmatprep.subr.bf16.mxu0 0
          %372 = vmatpush1.bf16.xpose.msra.mxu0 0
          %373 = vmatprep.subr.bf16.mxu0 0
          %374 = vmatpush1.bf16.xpose.msra.mxu0 0
          %375 = vmatprep.subr.bf16.mxu0 0
          %376 = vmatpush1.bf16.xpose.msra.mxu0 0
          %377 = vmatprep.subr.bf16.mxu0 0
          %378 = vmatpush1.bf16.xpose.msra.mxu0 0
          %379 = vmatprep.subr.bf16.mxu0 0
          %380 = vmatpush1.bf16.xpose.msra.mxu0 0
          %381 = vmatprep.subr.bf16.mxu0 0
          %382 = vmatpush1.bf16.xpose.msra.mxu0 0
          %383 = vmatprep.subr.bf16.mxu0 0
          %384 = vmatpush1.bf16.xpose.msra.mxu0 0
          %385 = vmatprep.subr.bf16.mxu0 0
          %386 = vmatpush1.bf16.xpose.msra.mxu0 0
          %387 = vmatprep.subr.bf16.mxu0 0
          %388 = vmatpush1.bf16.xpose.msra.mxu0 0
          %389 = vmatprep.subr.bf16.mxu0 0
          %390 = vmatpush1.bf16.xpose.msra.mxu0 0
          %391 = vmatprep.subr.bf16.mxu0 0
          %392 = vmatpush1.bf16.xpose.msra.mxu0 0
          %393 = vmatprep.subr.bf16.mxu0 0
          %394 = vmatpush1.bf16.xpose.msra.mxu0 0
          %395 = vmatprep.subr.bf16.mxu0 0
          %396 = vmatpush1.bf16.xpose.msra.mxu0 0
          %397 = vmatprep.subr.bf16.mxu0 0
          %398 = vmatpush1.bf16.xpose.msra.mxu0 0
          %399 = vmatprep.subr.bf16.mxu0 0
          %400 = vmatpush1.bf16.xpose.msra.mxu0 0
          %401 = vmatprep.mubr.bf16.mxu0 0
          %402 = vmatmul.mubr.bf16.gmra.mrb[0].mxu0 %v364
          %v403 = vpop.f32.mrb[0].mxu0
          %v404 = vadd.f32 0.0, %v403
          %v405 = vpop.f32.mrb[0].mxu0
          %v406 = vpop.f32.mrb[0].mxu0
          %v407 = vadd.f32 0.0, %v406
          %v408 = vpop.f32.mrb[0].mxu0
          %409 = vdwg.mxu0
          %v410 = vmax.f32 %v308, %v404
          %v411 = vmax.f32 %v309, %v407
          %v412 = vsel %vm351, inf, %v306
          %v413 = vsel %vm352, inf, %v307
        $region37: #{tpu_custom_call.1} parent=31 // loop_footer
          %s305 = sadd.s32 1, %s301
        $region38: #{tpu_custom_call.1} parent=31 // loop_footer_branch
          %300 = sbr.rel target = $region34
        $region39: #{tpu_custom_call.1} parent=31 // loop_exit
          _
        %vm414 = vcmask 130048
        %415 = vst.msk [vmem:[%s216] sm:$0xff] %vm414, %v308
        %416 = vst.msk [vmem:[%s216 + $0x8] sm:$0xff] %vm414, %v309
        %s417 = sand.u32 %s119, 1
        %s418 = scalar_lea.sflag [#allocation3], %s417
        %s419 = sand.u32 %s119, 1
        %s420 = smul.addr %s419, 16
        %s421 = scalar_lea.vmem [#allocation2], %s420
        // Predicated region
        $region40: #{tpu_custom_call.1} parent=31 // pred_check
          %p422 = pneg %p129
        $region41: #{tpu_custom_call.1} parent=31 // pred_check_branch
          %424 = sbr.rel (%p422) target = $region43
        $region42: #{tpu_custom_call.1} parent=31 // pred_region
          %s426 = ssub.s32 256, 256
          %427 = vsyncadd %s418, %s426
          %s428 = smul.addr %s21, 2
          %s429 = sadd.s32 %s22, %s428
          %s430 = smul.addr %s429, 128
          %s431 = scalar_lea.hbm %s3, %s430
          %s432 = sshll.u32 %s421, 4
          %s433 = int_to_ptr.vmem [resolvable:$true] %s432
          %438 = dma.vmem_to_hbm [thread:$0]  %s433, 256, %s431, %s418, 128, 128, 8
        $region43: #{tpu_custom_call.1} parent=31 // pred_fallthru
          _
      $region32: #{tpu_custom_call.1} parent=5 // pred_fallthru
        _
      %p439 = scmp.le.s32.totalorder 2, %s12
      // Predicated region
      $region44: #{tpu_custom_call.1} parent=5 // pred_check
        %p440 = pneg %p439
      $region45: #{tpu_custom_call.1} parent=5 // pred_check_branch
        %442 = sbr.rel (%p440) target = $region47
      $region46: #{tpu_custom_call.1} parent=5 // pred_region
        %s443 = ssub.s32 %s12, 2
        // Predicated region
        $region48: #{tpu_custom_call.1} parent=46 // pred_check
          %p444 = pneg %p135
        $region49: #{tpu_custom_call.1} parent=46 // pred_check_branch
          %446 = sbr.rel (%p444) target = $region51
        $region50: #{tpu_custom_call.1} parent=46 // pred_region
          %s447 = sand.u32 %s120, 1
          %s448 = scalar_lea.sflag [#allocation3], %s447
          %s449 = sand.u32 %s120, 1
          %s450 = smul.addr %s449, 16
          %s451 = scalar_lea.vmem [#allocation2], %s450
          %452 = dma.done %s448, 256
        $region51: #{tpu_custom_call.1} parent=46 // pred_fallthru
          _
      $region47: #{tpu_custom_call.1} parent=5 // pred_fallthru
        _
    $region6: #{tpu_custom_call.1} parent=1 // loop_footer
      %s16 = sadd.s32 1, %s12
    $region7: #{tpu_custom_call.1} parent=1 // loop_footer_branch
      %11 = sbr.rel target = $region3
    $region8: #{tpu_custom_call.1} parent=1 // loop_exit
      _
    %453 = vsyncpa [#allocation3], 1
    %s454 = scalar_lea.sflag [#allocation3], 1
    %455 = vsyncpa %s454, 1

</llo_original>
